<compile_context>
chip_gen: v7x
topology: tpu7x:2x2x1
jax: 0.10.0
libtpu: 0.0.40
codegen_flags: <defaults>
</compile_context>

<pallas_src>
import jax
import jax.numpy as jnp
import numpy as np
from jax.experimental import pallas as pl
from jax.experimental.pallas import tpu as pltpu

CIN = 16          # adjusted from 17 (see TODO above)
COUT = 2
GROUPS = 2
KH, KW = 2, 3
PAD_H, PAD_W = 1, 1
OUT_PAD_H, OUT_PAD_W = 2, 2
ICG = CIN // GROUPS      # in-channels per group
OCG = COUT // GROUPS     # out-channels per group


def _out_hw(H, W):
    Ho = (H - 1) - 2 * PAD_H + (KH - 1) + OUT_PAD_H + 1
    Wo = (W - 1) - 2 * PAD_W + (KW - 1) + OUT_PAD_W + 1
    return Ho, Wo


def dense_convt_tanh_kernel(xt_ref, m_ref, b_ref, out_ref):
    # xt_ref : (CIN*H*W, B)  input slab, batch along lanes            (VMEM)
    # m_ref  : (P, CIN*H*W)  dense block-diagonal conv-transpose map  (VMEM)
    # b_ref  : (P, 1)        per-output-row bias                      (VMEM)
    # out_ref: (P, B)        lane-dense output slab                   (VMEM)
    y = jnp.dot(m_ref[...], xt_ref[...], preferred_element_type=jnp.float32)
    out_ref[...] = jnp.tanh(y + b_ref[...])


def _build_dense_map(weight, H, W, Ho, Wo):
    """(P, CIN*H*W) dense map equivalent to the grouped ConvTranspose2d.

    Static scatter indices (built with plain Python ints at trace time);
    only the gathered weight values are traced.  Built once per call in the
    wrapper, never inside the kernel.
    """
    P = COUT * Ho * Wo
    K = CIN * H * W
    rows, cols, widx = [], [], []
    for g in range(GROUPS):
        for ic in range(ICG):
            cin = g * ICG + ic
            for o in range(OCG):
                oc = g * OCG + o
                for ih in range(H):
                    for iw in range(W):
                        for kh in range(KH):
                            for kw in range(KW):
                                oh = ih - PAD_H + kh
                                ow = iw - PAD_W + kw
                                if 0 <= oh < Ho and 0 <= ow < Wo:
                                    rows.append(oc * Ho * Wo + oh * Wo + ow)
                                    cols.append(cin * H * W + ih * W + iw)
                                    widx.append(
                                        ((cin * OCG + o) * KH + kh) * KW + kw)
    rows = np.asarray(rows, np.int32)
    cols = np.asarray(cols, np.int32)
    widx = np.asarray(widx, np.int32)
    vals = weight.astype(jnp.float32).reshape(-1)[widx]
    return jnp.zeros((P, K), jnp.float32).at[rows, cols].add(vals)


def _pick_batch_block(N):
    if N >= 512:
        return 256      # lane width multiple of 256 (v6e/v7x MXU width)
    if N >= 128:
        return 128      # lane-dense (v5e MXU width), keeps grid >= 2 blocks
    return N            # tiny batch: single full block


def conv_transpose_tanh(x, weight, bias):
    """x: (N, CIN, H, W) f32, weight: (CIN, OCG, KH, KW), bias: (COUT,)."""
    N, cin, H, W = x.shape
    assert cin == CIN and CIN % GROUPS == 0 and COUT % GROUPS == 0
    Ho, Wo = _out_hw(H, W)
    P = COUT * Ho * Wo
    K = CIN * H * W

    # Hoisted, grid-invariant operands (computed once per call in the wrapper).
    M = _build_dense_map(weight, H, W, Ho, Wo)                    # (P, K)
    bvec = jnp.repeat(bias.astype(jnp.float32), Ho * Wo).reshape(P, 1)

    # Batch folded into the lane dimension of the kernel operands.
    xt = x.astype(jnp.float32).reshape(N, K).T                    # (K, N)
    B = _pick_batch_block(N)
    n_blocks = pl.cdiv(N, B)
    Npad = n_blocks * B
    if Npad != N:
        xt = jnp.pad(xt, ((0, 0), (0, Npad - N)))

    flops = 2 * P * K * Npad
    bytes_accessed = 4 * (K * Npad + P * K + P + P * Npad)

    out = pl.pallas_call(
        dense_convt_tanh_kernel,
        out_shape=jax.ShapeDtypeStruct((P, Npad), jnp.float32),
        grid=(n_blocks,),
        in_specs=[
            pl.BlockSpec((K, B), lambda i: (0, i)),       # batch block of input
            pl.BlockSpec((P, K), lambda i: (0, 0)),       # grid-invariant map
            pl.BlockSpec((P, 1), lambda i: (0, 0)),       # grid-invariant bias
        ],
        out_specs=pl.BlockSpec((P, B), lambda i: (0, i)),
        compiler_params=pltpu.CompilerParams(
            dimension_semantics=("parallel",)),
        cost_estimate=pl.CostEstimate(
            flops=flops,
            transcendentals=P * Npad,
            bytes_accessed=bytes_accessed),
    )(xt, M, bvec)

    # Layout plumbing back to (N, COUT, Ho, Wo).
    return out[:, :N].T.reshape(N, COUT, Ho, Wo)


def _reference(x, weight, bias):
    """Numpy transposed-conv + tanh reference (same extended semantics)."""
    x = np.asarray(x, np.float32)
    w = np.asarray(weight, np.float32)
    b = np.asarray(bias, np.float32)
    N, _, H, W = x.shape
    Ho, Wo = _out_hw(H, W)
    out = np.zeros((N, COUT, Ho, Wo), np.float32) + b.reshape(1, COUT, 1, 1)
    for g in range(GROUPS):
        for ic in range(ICG):
            cin = g * ICG + ic
            for o in range(OCG):
                oc = g * OCG + o
                for ih in range(H):
                    for iw in range(W):
                        for kh in range(KH):
                            for kw in range(KW):
                                oh = ih - PAD_H + kh
                                ow = iw - PAD_W + kw
                                if 0 <= oh < Ho and 0 <= ow < Wo:
                                    out[:, oc, oh, ow] += (
                                        x[:, cin, ih, iw] * w[cin, o, kh, kw])
    return np.tanh(out)


if __name__ == "__main__":
    key = jax.random.PRNGKey(0)
    kx, kw_, kb = jax.random.split(key, 3)

    # Input analogous to torch.randn(1, 17, 2, 2): CIN adjusted to 16; batch
    # raised to 256 so the kernel runs lane-dense blocks and a 2-step
    # parallel grid (exercises megacore on v7x) while staying tiny (64 KiB).
    N, H, W = 256, 2, 2
    x = jax.random.normal(kx, (N, CIN, H, W), dtype=jnp.float32)

    # Deterministic parameter init (PyTorch-style uniform +/- 1/sqrt(fan)).
    fan = OCG * KH * KW
    bound = 1.0 / np.sqrt(fan)
    weight = jax.random.uniform(kw_, (CIN, OCG, KH, KW),
                                minval=-bound, maxval=bound, dtype=jnp.float32)
    bias = jax.random.uniform(kb, (COUT,),
                              minval=-bound, maxval=bound, dtype=jnp.float32)

    out = jax.block_until_ready(jax.jit(conv_transpose_tanh)(x, weight, bias))

    ref = _reference(np.asarray(x), np.asarray(weight), np.asarray(bias))
    np.testing.assert_allclose(np.asarray(out), ref, rtol=1e-5, atol=1e-5)

    print("KERNEL_OK")
</pallas_src>

<mosaic_0001>
module attributes {stable_mosaic.version = 11 : i64} {
  func.func private @main(%arg0: i32) attributes {dimension_semantics = [#tpu.dimension_semantics<core_parallel>], iteration_bounds = array<i64: 2>, tpu.core_type = #tpu.core_type<sc_scalar_subcore>, window_params = []} {
    return
  }
}

module attributes {stable_mosaic.version = 11 : i64} {
  func.func private @main(%arg0: i32) attributes {dimension_semantics = [#tpu.dimension_semantics<core_parallel>], iteration_bounds = array<i64: 2>, tpu.core_type = #tpu.core_type<sc_scalar_subcore>, window_params = []} {
    return
  }
}

module attributes {stable_mosaic.version = 11 : i64} {
  func.func @dense_convt_tanh_kernel(%arg0: i32, %arg1: memref<64x128xf32, #tpu.memory_space<vmem>>, %arg2: memref<24x64xf32, #tpu.memory_space<vmem>>, %arg3: memref<24x1xf32, #tpu.memory_space<vmem>>, %arg4: memref<24x128xf32, #tpu.memory_space<vmem>>) attributes {dimension_semantics = [#tpu.dimension_semantics<parallel>], iteration_bounds = array<i64: 2>, scalar_prefetch = 0 : i64, scratch_operands = 0 : i64, tpu.core_type = #tpu.core_type<tc>, window_params = [{transform_indices = @transform_0, window_bounds = array<i64: 64, 128>}, {pipeline_mode = #tpu.pipeline_mode<synchronous>, transform_indices = @transform_1, window_bounds = array<i64: 24, 64>}, {pipeline_mode = #tpu.pipeline_mode<synchronous>, transform_indices = @transform_2, window_bounds = array<i64: 24, 1>}, {transform_indices = @transform_3, window_bounds = array<i64: 24, 128>}]} {
    %c0 = arith.constant 0 : index
    %c0_0 = arith.constant 0 : index
    %0 = vector.load %arg2[%c0, %c0_0] : memref<24x64xf32, #tpu.memory_space<vmem>>, vector<24x64xf32>
    %c0_1 = arith.constant 0 : index
    %c0_2 = arith.constant 0 : index
    %1 = vector.load %arg1[%c0_1, %c0_2] : memref<64x128xf32, #tpu.memory_space<vmem>>, vector<64x128xf32>
    %cst = arith.constant dense<0.000000e+00> : vector<24x128xf32>
    %2 = tpu.matmul %0, %1, %cst {dimension_numbers = #tpu.dot_dimension_numbers<[1], [0], [0], [1], [0, 0, 1, 1], [], []>} : vector<24x64xf32>, vector<64x128xf32>, vector<24x128xf32> -> vector<24x128xf32>
    %c0_3 = arith.constant 0 : index
    %c0_4 = arith.constant 0 : index
    %3 = vector.load %arg3[%c0_3, %c0_4] : memref<24x1xf32, #tpu.memory_space<vmem>>, vector<24x1xf32>
    %4 = vector.broadcast %3 : vector<24x1xf32> to vector<24x128xf32>
    %5 = arith.addf %2, %4 : vector<24x128xf32>
    %6 = math.tanh %5 : vector<24x128xf32>
    %c0_5 = arith.constant 0 : index
    %c0_6 = arith.constant 0 : index
    %7 = vector.load %arg4[%c0_5, %c0_6] : memref<24x128xf32, #tpu.memory_space<vmem>>, vector<24x128xf32>
    tpu.vector_store %arg4[%c0_5, %c0_6], %6 {strides = array<i32>} : memref<24x128xf32, #tpu.memory_space<vmem>>, vector<24x128xf32>,
    return
  }
  func.func @transform_0(%arg0: i32) -> (i32, i32) {
    %c0_i32 = arith.constant 0 : i32
    %c0_i32_0 = arith.constant 0 : i32
    return %c0_i32, %arg0 : i32, i32
  }
  func.func @transform_1(%arg0: i32) -> (i32, i32) {
    %c0_i32 = arith.constant 0 : i32
    %c0_i32_0 = arith.constant 0 : i32
    %c0_i32_1 = arith.constant 0 : i32
    return %c0_i32, %c0_i32_0 : i32, i32
  }
  func.func @transform_2(%arg0: i32) -> (i32, i32) {
    %c0_i32 = arith.constant 0 : i32
    %c0_i32_0 = arith.constant 0 : i32
    %c0_i32_1 = arith.constant 0 : i32
    return %c0_i32, %c0_i32_0 : i32, i32
  }
  func.func @transform_3(%arg0: i32) -> (i32, i32) {
    %c0_i32 = arith.constant 0 : i32
    %c0_i32_0 = arith.constant 0 : i32
    return %c0_i32, %arg0 : i32, i32
  }
}

</mosaic_0001>

<llo_original>
// kernel: conv_transpose_tanh.1
$region0: #{conv_transpose_tanh.1}
  #allocation0 [shape = 'u32[]', space=smem, size = 0x4, offset = 0x4, fixed_abs, tag = 'smem constant byte address 0x4 - core index']
  #allocation1 [shape = 'u32[144,128]{1,0:T(1,128)}', space=vmem, size = 0x12000, scoped, tag = 'internal scratch']
  %s0 = inlined_call_operand.vmem [shape: f32[64,256], index: 0, kind: input, shape index: {}]
  %s1 = inlined_call_operand.hbm [shape: f32[24,64], index: 1, kind: input, shape index: {}]
  %s2 = inlined_call_operand.vmem [shape: f32[24,1], index: 2, kind: input, shape index: {}]
  %s3 = inlined_call_operand.vmem [shape: f32[24,256], index: 3, kind: output, shape index: {}]
  %s4 = sld [smem:[#allocation0]]
  $region121: #{conv_transpose_tanh.1} parent=0
    _
  %s6 = ssub.s32 1, %s4
  %s7 = scalar_select 0, %s6, %s4
  $region1: #{conv_transpose_tanh.1} parent=0
    #allocation2 [shape = 'u8[65536]{0}', space=vmem, size = 0x10000, scoped, tag = 'input window, operand 0']
    #allocation3 [shape = 'u8[12288]{0}', space=vmem, size = 0x3000, scoped, tag = 'input window, operand 1, single buffered']
    #allocation4 [shape = 's32[2]{0}', space=sflag, size = 0x8, scoped, tag = 'scoped memory for conv_transpose_tanh.1']
    #allocation5 [shape = 'u8[24576]{0}', space=vmem, size = 0x6000, scoped, tag = 'output window, operand 0']
    %8 = vsyncpa [#allocation4], 0
    loop: start=0, step=1, limit=4
    $region2: #{conv_transpose_tanh.1} parent=1 // loop_pre_header
      _
    $region3: #{conv_transpose_tanh.1} parent=1 // loop_header
      %s10 = sphi 0, %s14
      %p11 = scmp.ge.s32.totalorder %s10, 4
      %s20 = sphi 0, %s22
      %s23 = sphi 0, %s20
      %s24 = sphi 0, %s23
      %s40 = sphi 0, %s24
      %s44 = sphi 0, %s44
      %s46 = sphi 0, %s44
      %s47 = sphi 0, %s46
      %s61 = sphi 0, %s47
      %s65 = sphi 0, %s65
      %s67 = sphi 0, %s65
      %s68 = sphi 0, %s67
      %s82 = sphi 0, %s68
      %s88 = sphi 0, %s90
      %s91 = sphi 0, %s88
      %s92 = sphi 0, %s91
      %s108 = sphi 0, %s92
    $region4: #{conv_transpose_tanh.1} parent=1 // loop_header_branch
      %13 = sbr.rel (%p11) target = $region8
    $region5: #{conv_transpose_tanh.1} parent=1 // loop_body
      %s15 = ssub.s32 %s10, 1
      %s16 = ssub.s32 %s10, 2
      %s17 = sadd.s32 %s10, 1
      %s18 = ssub.s32 %s10, %s17
      %p19 = scmp.eq.s32.totalorder %s18, 0
      %s21 = sadd.s32 %s20, 1
      %s22 = scalar_select %p19, %s20, %s21
      %p25 = pneg %p19
      %p26 = scmp.eq.s32.totalorder %s10, 1
      %p27 = por %p25, %p26
      %p28 = scmp.ne.s32.totalorder %s20, %s23
      %p29 = scmp.eq.s32.totalorder %s10, 0
      %p30 = por %p28, %p29
      %p31 = scmp.ne.s32.totalorder %s20, %s23
      %p32 = scmp.eq.s32.totalorder %s15, 1
      %p33 = por %p31, %p32
      %p34 = scmp.ne.s32.totalorder %s23, %s24
      %p35 = scmp.eq.s32.totalorder %s15, 0
      %p36 = por %p34, %p35
      %p37 = scmp.ne.s32.totalorder %s23, %s24
      %p38 = scmp.eq.s32.totalorder %s16, 1
      %p39 = por %p37, %p38
      %p41 = scmp.ne.s32.totalorder %s24, %s40
      %p42 = scmp.eq.s32.totalorder %s16, 0
      %p43 = por %p41, %p42
      %s45 = sadd.s32 %s44, 1
      %p48 = scmp.eq.s32.totalorder %s10, 1
      %p49 = scmp.ne.s32.totalorder %s44, %s46
      %p50 = scmp.eq.s32.totalorder %s10, 0
      %p51 = por %p49, %p50
      %p52 = scmp.ne.s32.totalorder %s44, %s46
      %p53 = scmp.eq.s32.totalorder %s15, 1
      %p54 = por %p52, %p53
      %p55 = scmp.ne.s32.totalorder %s46, %s47
      %p56 = scmp.eq.s32.totalorder %s15, 0
      %p57 = por %p55, %p56
      %p58 = scmp.ne.s32.totalorder %s46, %s47
      %p59 = scmp.eq.s32.totalorder %s16, 1
      %p60 = por %p58, %p59
      %p62 = scmp.ne.s32.totalorder %s47, %s61
      %p63 = scmp.eq.s32.totalorder %s16, 0
      %p64 = por %p62, %p63
      %s66 = sadd.s32 %s65, 1
      %p69 = scmp.eq.s32.totalorder %s10, 1
      %p70 = scmp.ne.s32.totalorder %s65, %s67
      %p71 = scmp.eq.s32.totalorder %s10, 0
      %p72 = por %p70, %p71
      %p73 = scmp.ne.s32.totalorder %s65, %s67
      %p74 = scmp.eq.s32.totalorder %s15, 1
      %p75 = por %p73, %p74
      %p76 = scmp.ne.s32.totalorder %s67, %s68
      %p77 = scmp.eq.s32.totalorder %s15, 0
      %p78 = por %p76, %p77
      %p79 = scmp.ne.s32.totalorder %s67, %s68
      %p80 = scmp.eq.s32.totalorder %s16, 1
      %p81 = por %p79, %p80
      %p83 = scmp.ne.s32.totalorder %s68, %s82
      %p84 = scmp.eq.s32.totalorder %s16, 0
      %p85 = por %p83, %p84
      %s86 = ssub.s32 %s10, %s17
      %p87 = scmp.eq.s32.totalorder %s86, 0
      %s89 = sadd.s32 %s88, 1
      %s90 = scalar_select %p87, %s88, %s89
      %p93 = pneg %p87
      %p94 = scmp.eq.s32.totalorder %s10, 1
      %p95 = por %p93, %p94
      %p96 = scmp.ne.s32.totalorder %s88, %s91
      %p97 = scmp.eq.s32.totalorder %s10, 0
      %p98 = por %p96, %p97
      %p99 = scmp.ne.s32.totalorder %s88, %s91
      %p100 = scmp.eq.s32.totalorder %s15, 1
      %p101 = por %p99, %p100
      %p102 = scmp.ne.s32.totalorder %s91, %s92
      %p103 = scmp.eq.s32.totalorder %s15, 0
      %p104 = por %p102, %p103
      %p105 = scmp.ne.s32.totalorder %s91, %s92
      %p106 = scmp.eq.s32.totalorder %s16, 1
      %p107 = por %p105, %p106
      %p109 = scmp.ne.s32.totalorder %s92, %s108
      %p110 = scmp.eq.s32.totalorder %s16, 0
      %p111 = por %p109, %p110
      %p112 = scmp.le.s32.totalorder 1, %s10
      %p113 = scmp.lt.s32.totalorder %s10, 3
      %p114 = pnand %p112, %p113
      %p115 = pneg %p114
      // Predicated region
      $region9: #{conv_transpose_tanh.1} parent=5 // pred_check
        _
      $region10: #{conv_transpose_tanh.1} parent=5 // pred_check_branch
        %117 = sbr.rel (%p114) target = $region12
      $region11: #{conv_transpose_tanh.1} parent=5 // pred_region
        %s118 = ssub.s32 %s10, 1
        // Predicated region
        $region13: #{conv_transpose_tanh.1} parent=11 // pred_check
          %p119 = pneg %p57
        $region14: #{conv_transpose_tanh.1} parent=11 // pred_check_branch
          %121 = sbr.rel (%p119) target = $region16
        $region15: #{conv_transpose_tanh.1} parent=11 // pred_region
          %s123 = ssub.s32 384, 384
          %124 = vsyncadd [#allocation4], %s123
          %s125 = sshll.u32 [#allocation3], 4
          %s126 = int_to_ptr.vmem [resolvable:$true] %s125
          %131 = dma.hbm_to_vmem [thread:$0]  %s1, 384, %s126, [#allocation4], 128, 128, 8
        $region16: #{conv_transpose_tanh.1} parent=11 // pred_fallthru
          _
        // Predicated region
        $region17: #{conv_transpose_tanh.1} parent=11 // pred_check
          %p132 = pneg %p78
        $region18: #{conv_transpose_tanh.1} parent=11 // pred_check_branch
          %134 = sbr.rel (%p132) target = $region20
        $region19: #{conv_transpose_tanh.1} parent=11 // pred_region
          _
        $region20: #{conv_transpose_tanh.1} parent=11 // pred_fallthru
          _
      $region12: #{conv_transpose_tanh.1} parent=5 // pred_fallthru
        _
      %p135 = scmp.lt.s32.totalorder %s10, 2
      // Predicated region
      $region21: #{conv_transpose_tanh.1} parent=5 // pred_check
        %p136 = pneg %p135
      $region22: #{conv_transpose_tanh.1} parent=5 // pred_check_branch
        %138 = sbr.rel (%p136) target = $region24
      $region23: #{conv_transpose_tanh.1} parent=5 // pred_region
        // Predicated region
        $region25: #{conv_transpose_tanh.1} parent=23 // pred_check
          %p139 = pneg %p30
        $region26: #{conv_transpose_tanh.1} parent=23 // pred_check_branch
          %141 = sbr.rel (%p139) target = $region28
        $region27: #{conv_transpose_tanh.1} parent=23 // pred_region
          %s142 = sand.u32 %s20, 1
          %s143 = sand.u32 %s20, 1
          %s144 = smul.addr %s143, 64
          %s145 = scalar_lea.vmem [#allocation2], %s144
          %s146 = smul.addr %s10, 8
          %s147 = scalar_lea.vmem %s0, %s146
          // Predicated region
          $region29: #{conv_transpose_tanh.1} parent=27 // pred_check
            _
          $region30: #{conv_transpose_tanh.1} parent=27 // pred_check_branch
            %149 = sbr.rel (0) target = $region32
          $region31: #{conv_transpose_tanh.1} parent=27 // pred_region
            // Predicated region
            $region33: #{conv_transpose_tanh.1} parent=31 // pred_check
              _
            $region34: #{conv_transpose_tanh.1} parent=31 // pred_check_branch
              %151 = sbr.rel (0) target = $region36
            $region35: #{conv_transpose_tanh.1} parent=31 // pred_region
              // Predicated region
              $region48: #{conv_transpose_tanh.1} parent=35 // pred_check
                _
              $region49: #{conv_transpose_tanh.1} parent=35 // pred_check_branch
                %180 = sbr.rel (0) target = $region51
              $region50: #{conv_transpose_tanh.1} parent=35 // pred_region
                loop: start=0, step=1, limit=1
                $region52: #{conv_transpose_tanh.1} parent=50 // loop_pre_header
                  _
                $region53: #{conv_transpose_tanh.1} parent=50 // loop_header
                  %s182 = sphi 0, %s186
                  %p183 = scmp.ge.s32.totalorder %s182, 1
                  %s187 = sphi %s147, %s147
                  %s188 = sphi %s145, %s145
                $region54: #{conv_transpose_tanh.1} parent=50 // loop_header_branch
                  %185 = sbr.rel (%p183) target = $region58
                $region55: #{conv_transpose_tanh.1} parent=50 // loop_body
                  %v189 = vld [vmem:[%s187] sm:$0xff]
                  %190 = vst [vmem:[%s188] sm:$0xff] %v189
                  %v191 = vld [vmem:[%s187 + $0x10] sm:$0xff]
                  %192 = vst [vmem:[%s188 + $0x8] sm:$0xff] %v191
                  %v193 = vld [vmem:[%s187 + $0x20] sm:$0xff]
                  %194 = vst [vmem:[%s188 + $0x10] sm:$0xff] %v193
                  %v195 = vld [vmem:[%s187 + $0x30] sm:$0xff]
                  %196 = vst [vmem:[%s188 + $0x18] sm:$0xff] %v195
                  %v197 = vld [vmem:[%s187 + $0x40] sm:$0xff]
                  %198 = vst [vmem:[%s188 + $0x20] sm:$0xff] %v197
                  %v199 = vld [vmem:[%s187 + $0x50] sm:$0xff]
                  %200 = vst [vmem:[%s188 + $0x28] sm:$0xff] %v199
                  %v201 = vld [vmem:[%s187 + $0x60] sm:$0xff]
                  %202 = vst [vmem:[%s188 + $0x30] sm:$0xff] %v201
                  %v203 = vld [vmem:[%s187 + $0x70] sm:$0xff]
                  %204 = vst [vmem:[%s188 + $0x38] sm:$0xff] %v203
                $region56: #{conv_transpose_tanh.1} parent=50 // loop_footer
                  %s186 = sadd.s32 1, %s182
                $region57: #{conv_transpose_tanh.1} parent=50 // loop_footer_branch
                  %181 = sbr.rel target = $region53
                $region58: #{conv_transpose_tanh.1} parent=50 // loop_exit
                  _
              $region51: #{conv_transpose_tanh.1} parent=35 // pred_fallthru
                _
              // Predicated region
              $region59: #{conv_transpose_tanh.1} parent=35 // pred_check
                _
              $region60: #{conv_transpose_tanh.1} parent=35 // pred_check_branch
                %206 = sbr.rel target = $region62
              $region61: #{conv_transpose_tanh.1} parent=35 // pred_region
                _
              $region62: #{conv_transpose_tanh.1} parent=35 // pred_fallthru
                _
            $region36: #{conv_transpose_tanh.1} parent=31 // pred_fallthru
              _
            // Predicated region
            $region37: #{conv_transpose_tanh.1} parent=31 // pred_check
              _
            $region38: #{conv_transpose_tanh.1} parent=31 // pred_check_branch
              %153 = sbr.rel target = $region40
            $region39: #{conv_transpose_tanh.1} parent=31 // pred_region
              loop: start=0, step=1, limit=1
              $region41: #{conv_transpose_tanh.1} parent=39 // loop_pre_header
                _
              $region42: #{conv_transpose_tanh.1} parent=39 // loop_header
                %s156 = sphi 0, %s160
                %p157 = scmp.ge.s32.totalorder %s156, 1
                %s161 = sphi %s147, %s147
                %s162 = sphi %s145, %s145
              $region43: #{conv_transpose_tanh.1} parent=39 // loop_header_branch
                %159 = sbr.rel (%p157) target = $region47
              $region44: #{conv_transpose_tanh.1} parent=39 // loop_body
                %v163 = vld [vmem:[%s161] sm:$0xff]
                %164 = vst [vmem:[%s162] sm:$0xff] %v163
                %v165 = vld [vmem:[%s161 + $0x10] sm:$0xff]
                %166 = vst [vmem:[%s162 + $0x8] sm:$0xff] %v165
                %v167 = vld [vmem:[%s161 + $0x20] sm:$0xff]
                %168 = vst [vmem:[%s162 + $0x10] sm:$0xff] %v167
                %v169 = vld [vmem:[%s161 + $0x30] sm:$0xff]
                %170 = vst [vmem:[%s162 + $0x18] sm:$0xff] %v169
                %v171 = vld [vmem:[%s161 + $0x40] sm:$0xff]
                %172 = vst [vmem:[%s162 + $0x20] sm:$0xff] %v171
                %v173 = vld [vmem:[%s161 + $0x50] sm:$0xff]
                %174 = vst [vmem:[%s162 + $0x28] sm:$0xff] %v173
                %v175 = vld [vmem:[%s161 + $0x60] sm:$0xff]
                %176 = vst [vmem:[%s162 + $0x30] sm:$0xff] %v175
                %v177 = vld [vmem:[%s161 + $0x70] sm:$0xff]
                %178 = vst [vmem:[%s162 + $0x38] sm:$0xff] %v177
              $region45: #{conv_transpose_tanh.1} parent=39 // loop_footer
                %s160 = sadd.s32 1, %s156
              $region46: #{conv_transpose_tanh.1} parent=39 // loop_footer_branch
                %155 = sbr.rel target = $region42
              $region47: #{conv_transpose_tanh.1} parent=39 // loop_exit
                _
            $region40: #{conv_transpose_tanh.1} parent=31 // pred_fallthru
              _
          $region32: #{conv_transpose_tanh.1} parent=27 // pred_fallthru
            _
          %207 = vnop
        $region28: #{conv_transpose_tanh.1} parent=23 // pred_fallthru
          _
      $region24: #{conv_transpose_tanh.1} parent=5 // pred_fallthru
        _
      %p208 = scmp.le.s32.totalorder 1, %s10
      %p209 = scmp.lt.s32.totalorder %s10, 3
      %p210 = pnand %p208, %p209
      %p211 = pneg %p210
      // Predicated region
      $region63: #{conv_transpose_tanh.1} parent=5 // pred_check
        _
      $region64: #{conv_transpose_tanh.1} parent=5 // pred_check_branch
        %213 = sbr.rel (%p210) target = $region66
      $region65: #{conv_transpose_tanh.1} parent=5 // pred_region
        %s214 = ssub.s32 %s10, 1
        %s215 = sand.u32 %s23, 1
        %s216 = sand.u32 %s23, 1
        %s217 = smul.addr %s216, 64
        %s218 = scalar_lea.vmem [#allocation2], %s217
        // Predicated region
        $region67: #{conv_transpose_tanh.1} parent=65 // pred_check
          %p219 = pneg %p36
        $region68: #{conv_transpose_tanh.1} parent=65 // pred_check_branch
          %221 = sbr.rel (%p219) target = $region70
        $region69: #{conv_transpose_tanh.1} parent=65 // pred_region
          _
        $region70: #{conv_transpose_tanh.1} parent=65 // pred_fallthru
          _
        // Predicated region
        $region71: #{conv_transpose_tanh.1} parent=65 // pred_check
          %p222 = pneg %p57
        $region72: #{conv_transpose_tanh.1} parent=65 // pred_check_branch
          %224 = sbr.rel (%p222) target = $region74
        $region73: #{conv_transpose_tanh.1} parent=65 // pred_region
          %225 = dma.done [#allocation4], 384
        $region74: #{conv_transpose_tanh.1} parent=65 // pred_fallthru
          _
        %s226 = sand.u32 %s23, 1
        %s227 = sand.u32 %s23, 1
        %s228 = smul.addr %s227, 64
        %s229 = scalar_lea.vmem [#allocation2], %s228
        %p230 = pneg %p36
        %p231 = pneg %p33
        %p232 = pneg %p57
        %p233 = pneg %p54
        %p234 = pneg %p78
        %p235 = pneg %p75
        %p236 = pneg %p104
        %p237 = pneg %p101
        %s238 = sand.u32 %s91, 1
        %s239 = sand.u32 %s91, 1
        %s240 = smul.addr %s239, 24
        %s241 = scalar_lea.vmem [#allocation5], %s240
        %v242 = vld [vmem:[#allocation3] sm:$0xff]
        %v243 = vld [vmem:[#allocation3 + $0x8] sm:$0xff]
        %v244 = vld [vmem:[#allocation3 + $0x10] sm:$0xff]
        %v245 = vld [vmem:[%s218] sm:$0xff]
        %v246 = vld [vmem:[%s218 + $0x8] sm:$0xff]
        %v247 = vld [vmem:[%s218 + $0x10] sm:$0xff]
        %v248 = vld [vmem:[%s218 + $0x18] sm:$0xff]
        %v249 = vld [vmem:[%s218 + $0x20] sm:$0xff]
        %v250 = vld [vmem:[%s218 + $0x28] sm:$0xff]
        %v251 = vld [vmem:[%s218 + $0x30] sm:$0xff]
        %v252 = vld [vmem:[%s218 + $0x38] sm:$0xff]
        %v253 = vld [vmem:[%s2] sm:$0xff]
        %v254 = vld [vmem:[%s2 + $0x8] sm:$0xff]
        %v255 = vld [vmem:[%s2 + $0x10] sm:$0xff]
        %257 = vset.pattern.permute.xlu0 0
        %258 = vperm.xlu0 %257, %v253
        %v259 = vpop.permute.xlu0 %258
        %262 = vset.pattern.permute.xlu0 0
        %263 = vperm.xlu0 %262, %v254
        %v264 = vpop.permute.xlu0 %263
        %267 = vset.pattern.permute.xlu0 0
        %268 = vperm.xlu0 %267, %v255
        %v269 = vpop.permute.xlu0 %268
        %vm271 = vcmask 523264
        %v273 = vsel %vm271, %v242, 0
        %v276 = vsel %vm271, %v243, 0
        %v279 = vsel %vm271, %v244, 0
        %281 = vmatprep.subr.mxu0 0.0
        %282 = vmatpush1.msra.mxu0 %v245
        %283 = vmatprep.subr.mxu0 0.0
        %284 = vmatpush1.msra.mxu0 %v246
        %285 = vmatprep.subr.mxu0 0.0
        %286 = vmatpush1.msra.mxu0 %v247
        %287 = vmatprep.subr.mxu0 0.0
        %288 = vmatpush1.msra.mxu0 %v248
        %289 = vmatprep.subr.mxu0 0.0
        %290 = vmatpush1.msra.mxu0 %v249
        %291 = vmatprep.subr.mxu0 0.0
        %292 = vmatpush1.msra.mxu0 %v250
        %293 = vmatprep.subr.mxu0 0.0
        %294 = vmatpush1.msra.mxu0 %v251
        %295 = vmatprep.subr.mxu0 0.0
        %296 = vmatpush1.msra.mxu0 %v252
        %297 = vmatprep.subr.mxu0 0.0
        %298 = vmatpush1.msra.mxu0 0.0
        %299 = vmatprep.subr.mxu0 0.0
        %300 = vmatpush1.msra.mxu0 0.0
        %301 = vmatprep.subr.mxu0 0.0
        %302 = vmatpush1.msra.mxu0 0.0
        %303 = vmatprep.subr.mxu0 0.0
        %304 = vmatpush1.msra.mxu0 0.0
        %305 = vmatprep.subr.mxu0 0.0
        %306 = vmatpush1.msra.mxu0 0.0
        %307 = vmatprep.subr.mxu0 0.0
        %308 = vmatpush1.msra.mxu0 0.0
        %309 = vmatprep.subr.mxu0 0.0
        %310 = vmatpush1.msra.mxu0 0.0
        %311 = vmatprep.subr.mxu0 0.0
        %312 = vmatpush1.msra.mxu0 0.0
        %313 = vmatprep.subr.mxu0 0.0
        %314 = vmatpush1.msra.mxu0 0.0
        %315 = vmatprep.subr.mxu0 0.0
        %316 = vmatpush1.msra.mxu0 0.0
        %317 = vmatprep.subr.mxu0 0.0
        %318 = vmatpush1.msra.mxu0 0.0
        %319 = vmatprep.subr.mxu0 0.0
        %320 = vmatpush1.msra.mxu0 0.0
        %321 = vmatprep.subr.mxu0 0.0
        %322 = vmatpush1.msra.mxu0 0.0
        %323 = vmatprep.subr.mxu0 0.0
        %324 = vmatpush1.msra.mxu0 0.0
        %325 = vmatprep.subr.mxu0 0.0
        %326 = vmatpush1.msra.mxu0 0.0
        %327 = vmatprep.subr.mxu0 0.0
        %328 = vmatpush1.msra.mxu0 0.0
        %329 = vmatprep.subr.mxu0 0.0
        %330 = vmatpush1.msra.mxu0 0.0
        %331 = vmatprep.subr.mxu0 0.0
        %332 = vmatpush1.msra.mxu0 0.0
        %333 = vmatprep.subr.mxu0 0.0
        %334 = vmatpush1.msra.mxu0 0.0
        %335 = vmatprep.subr.mxu0 0.0
        %336 = vmatpush1.msra.mxu0 0.0
        %337 = vmatprep.subr.mxu0 0.0
        %338 = vmatpush1.msra.mxu0 0.0
        %339 = vmatprep.subr.mxu0 0.0
        %340 = vmatpush1.msra.mxu0 0.0
        %341 = vmatprep.subr.mxu0 0.0
        %342 = vmatpush1.msra.mxu0 0.0
        %343 = vmatprep.subr.mxu0 0.0
        %344 = vmatpush1.msra.mxu0 0.0
        %345 = vmatprep.mubr.f32.mxu0 0.0
        %346 = vmatmul.mubr.f32.gmra.mrb[0].mxu0 %v273
        %v347 = vpop.f32.mrb[0].mxu0
        %v348 = vadd.f32 %v259, %v347
        %v349 = vpop.f32.mrb[0].mxu0
        %350 = vmatprep.mubr.f32.mxu0 0.0
        %351 = vmatmul.mubr.f32.gmra.mrb[0].mxu0 %v276
        %v352 = vpop.f32.mrb[0].mxu0
        %v353 = vadd.f32 %v264, %v352
        %v354 = vpop.f32.mrb[0].mxu0
        %355 = vmatprep.mubr.f32.mxu0 0.0
        %356 = vmatmul.mubr.f32.gmra.mrb[0].mxu0 %v279
        %v357 = vpop.f32.mrb[0].mxu0
        %v358 = vadd.f32 %v269, %v357
        %v359 = vpop.f32.mrb[0].mxu0
        %360 = vdwg.mxu0
        %v361 = vtanh.pop %v348
        %v362 = vtanh.pop %v353
        %v363 = vtanh.pop %v358
        %364 = vst [vmem:[%s241] sm:$0xff] %v361
        %365 = vst [vmem:[%s241 + $0x8] sm:$0xff] %v362
        %366 = vst [vmem:[%s241 + $0x10] sm:$0xff] %v363
        %s367 = sand.u32 %s91, 1
        %s368 = sand.u32 %s91, 1
        %s369 = smul.addr %s368, 24
        %s370 = scalar_lea.vmem [#allocation5], %s369
        // Predicated region
        $region75: #{conv_transpose_tanh.1} parent=65 // pred_check
          %p371 = pneg %p101
        $region76: #{conv_transpose_tanh.1} parent=65 // pred_check_branch
          %373 = sbr.rel (%p371) target = $region78
        $region77: #{conv_transpose_tanh.1} parent=65 // pred_region
          %s374 = smul.addr %s15, 8
          %s375 = scalar_lea.vmem %s3, %s374
          // Predicated region
          $region79: #{conv_transpose_tanh.1} parent=77 // pred_check
            _
          $region80: #{conv_transpose_tanh.1} parent=77 // pred_check_branch
            %377 = sbr.rel (0) target = $region82
          $region81: #{conv_transpose_tanh.1} parent=77 // pred_region
            // Predicated region
            $region83: #{conv_transpose_tanh.1} parent=81 // pred_check
              _
            $region84: #{conv_transpose_tanh.1} parent=81 // pred_check_branch
              %379 = sbr.rel (0) target = $region86
            $region85: #{conv_transpose_tanh.1} parent=81 // pred_region
              // Predicated region
              $region98: #{conv_transpose_tanh.1} parent=85 // pred_check
                _
              $region99: #{conv_transpose_tanh.1} parent=85 // pred_check_branch
                %398 = sbr.rel (0) target = $region101
              $region100: #{conv_transpose_tanh.1} parent=85 // pred_region
                loop: start=0, step=1, limit=1
                $region102: #{conv_transpose_tanh.1} parent=100 // loop_pre_header
                  _
                $region103: #{conv_transpose_tanh.1} parent=100 // loop_header
                  %s400 = sphi 0, %s404
                  %p401 = scmp.ge.s32.totalorder %s400, 1
                  %s405 = sphi %s370, %s370
                  %s406 = sphi %s375, %s375
                $region104: #{conv_transpose_tanh.1} parent=100 // loop_header_branch
                  %403 = sbr.rel (%p401) target = $region108
                $region105: #{conv_transpose_tanh.1} parent=100 // loop_body
                  %v407 = vld [vmem:[%s405] sm:$0xff]
                  %408 = vst [vmem:[%s406] sm:$0xff] %v407
                  %v409 = vld [vmem:[%s405 + $0x8] sm:$0xff]
                  %410 = vst [vmem:[%s406 + $0x10] sm:$0xff] %v409
                  %v411 = vld [vmem:[%s405 + $0x10] sm:$0xff]
                  %412 = vst [vmem:[%s406 + $0x20] sm:$0xff] %v411
                $region106: #{conv_transpose_tanh.1} parent=100 // loop_footer
                  %s404 = sadd.s32 1, %s400
                $region107: #{conv_transpose_tanh.1} parent=100 // loop_footer_branch
                  %399 = sbr.rel target = $region103
                $region108: #{conv_transpose_tanh.1} parent=100 // loop_exit
                  _
              $region101: #{conv_transpose_tanh.1} parent=85 // pred_fallthru
                _
              // Predicated region
              $region109: #{conv_transpose_tanh.1} parent=85 // pred_check
                _
              $region110: #{conv_transpose_tanh.1} parent=85 // pred_check_branch
                %414 = sbr.rel target = $region112
              $region111: #{conv_transpose_tanh.1} parent=85 // pred_region
                _
              $region112: #{conv_transpose_tanh.1} parent=85 // pred_fallthru
                _
            $region86: #{conv_transpose_tanh.1} parent=81 // pred_fallthru
              _
            // Predicated region
            $region87: #{conv_transpose_tanh.1} parent=81 // pred_check
              _
            $region88: #{conv_transpose_tanh.1} parent=81 // pred_check_branch
              %381 = sbr.rel target = $region90
            $region89: #{conv_transpose_tanh.1} parent=81 // pred_region
              loop: start=0, step=1, limit=1
              $region91: #{conv_transpose_tanh.1} parent=89 // loop_pre_header
                _
              $region92: #{conv_transpose_tanh.1} parent=89 // loop_header
                %s384 = sphi 0, %s388
                %p385 = scmp.ge.s32.totalorder %s384, 1
                %s389 = sphi %s370, %s370
                %s390 = sphi %s375, %s375
              $region93: #{conv_transpose_tanh.1} parent=89 // loop_header_branch
                %387 = sbr.rel (%p385) target = $region97
              $region94: #{conv_transpose_tanh.1} parent=89 // loop_body
                %v391 = vld [vmem:[%s389] sm:$0xff]
                %392 = vst [vmem:[%s390] sm:$0xff] %v391
                %v393 = vld [vmem:[%s389 + $0x8] sm:$0xff]
                %394 = vst [vmem:[%s390 + $0x10] sm:$0xff] %v393
                %v395 = vld [vmem:[%s389 + $0x10] sm:$0xff]
                %396 = vst [vmem:[%s390 + $0x20] sm:$0xff] %v395
              $region95: #{conv_transpose_tanh.1} parent=89 // loop_footer
                %s388 = sadd.s32 1, %s384
              $region96: #{conv_transpose_tanh.1} parent=89 // loop_footer_branch
                %383 = sbr.rel target = $region92
              $region97: #{conv_transpose_tanh.1} parent=89 // loop_exit
                _
            $region90: #{conv_transpose_tanh.1} parent=81 // pred_fallthru
              _
          $region82: #{conv_transpose_tanh.1} parent=77 // pred_fallthru
            _
          %415 = vnop
        $region78: #{conv_transpose_tanh.1} parent=65 // pred_fallthru
          _
      $region66: #{conv_transpose_tanh.1} parent=5 // pred_fallthru
        _
      %p416 = scmp.le.s32.totalorder 2, %s10
      // Predicated region
      $region113: #{conv_transpose_tanh.1} parent=5 // pred_check
        %p417 = pneg %p416
      $region114: #{conv_transpose_tanh.1} parent=5 // pred_check_branch
        %419 = sbr.rel (%p417) target = $region116
      $region115: #{conv_transpose_tanh.1} parent=5 // pred_region
        %s420 = ssub.s32 %s10, 2
        // Predicated region
        $region117: #{conv_transpose_tanh.1} parent=115 // pred_check
          %p421 = pneg %p107
        $region118: #{conv_transpose_tanh.1} parent=115 // pred_check_branch
          %423 = sbr.rel (%p421) target = $region120
        $region119: #{conv_transpose_tanh.1} parent=115 // pred_region
          %s424 = sand.u32 %s92, 1
          %s425 = sand.u32 %s92, 1
          %s426 = smul.addr %s425, 24
          %s427 = scalar_lea.vmem [#allocation5], %s426
        $region120: #{conv_transpose_tanh.1} parent=115 // pred_fallthru
          _
      $region116: #{conv_transpose_tanh.1} parent=5 // pred_fallthru
        _
    $region6: #{conv_transpose_tanh.1} parent=1 // loop_footer
      %s14 = sadd.s32 1, %s10
    $region7: #{conv_transpose_tanh.1} parent=1 // loop_footer_branch
      %9 = sbr.rel target = $region3
    $region8: #{conv_transpose_tanh.1} parent=1 // loop_exit
      _
    %428 = vsyncpa [#allocation4], 1
    %s429 = scalar_lea.sflag [#allocation4], 1
    %430 = vsyncpa %s429, 1

</llo_original>
